<compile_context>
chip_gen: v7x
topology: tpu7x:2x2x1
jax: 0.10.0
libtpu: 0.0.40
codegen_flags: <defaults>
</compile_context>

<pallas_src>
import functools

import jax
import jax.numpy as jnp
from jax.experimental import pallas as pl
from jax.experimental.pallas import tpu as pltpu


# ----------------------------------------------------------------------------
# tiling helper
# ----------------------------------------------------------------------------
def _pick_tile(dim, target, granule):
    """Largest divisor of `dim` that is <= target and a multiple of `granule`,
    else the full dim (small arrays use whole-array blocks)."""
    if dim <= target:
        return dim
    t = (target // granule) * granule
    while t >= granule:
        if dim % t == 0:
            return t
        t -= granule
    return dim


# ----------------------------------------------------------------------------
# tiled linear (+ optional fused ReLU), bf16 operands, f32 accumulation
# ----------------------------------------------------------------------------
def _linear_kernel(x_ref, w_ref, b_ref, o_ref, acc_ref, *, relu):
    @pl.when(pl.program_id(2) == 0)
    def _():
        acc_ref[...] = jnp.zeros_like(acc_ref)

    acc_ref[...] += jnp.dot(x_ref[...].astype(jnp.bfloat16),
                            w_ref[...],
                            preferred_element_type=jnp.float32)

    @pl.when(pl.program_id(2) == pl.num_programs(2) - 1)
    def _():
        y = acc_ref[...] + b_ref[...]
        if relu:
            y = jnp.maximum(y, 0.0)
        o_ref[...] = y


def linear(x, w, b, *, relu=False):
    """x: (M, K) f32 @ w: (K, N) bf16 + b: (N,) f32 -> (M, N) f32."""
    M, K = x.shape
    N = w.shape[1]
    tm = _pick_tile(M, 256, 8)
    tn = _pick_tile(N, 512, 128)
    tk = _pick_tile(K, 512, 128)
    grid = (M // tm, N // tn, K // tk)
    return pl.pallas_call(
        functools.partial(_linear_kernel, relu=relu),
        out_shape=jax.ShapeDtypeStruct((M, N), jnp.float32),
        grid=grid,
        in_specs=[
            pl.BlockSpec((tm, tk), lambda i, j, k: (i, k)),
            pl.BlockSpec((tk, tn), lambda i, j, k: (k, j)),
            pl.BlockSpec((1, tn), lambda i, j, k: (0, j)),
        ],
        out_specs=pl.BlockSpec((tm, tn), lambda i, j, k: (i, j)),
        scratch_shapes=[pltpu.VMEM((tm, tn), jnp.float32)],
        compiler_params=pltpu.CompilerParams(
            dimension_semantics=("parallel", "parallel", "arbitrary"),
            vmem_limit_bytes=32 * 1024 * 1024),
    )(x, w, b.reshape(1, N))


# ----------------------------------------------------------------------------
# LayerNorm (optionally with fused residual add), stats in f32
# ----------------------------------------------------------------------------
def _ln_body(s, g_ref, b_ref, o_ref, eps):
    mean = jnp.mean(s, axis=-1, keepdims=True)
    xc = s - mean
    var = jnp.mean(xc * xc, axis=-1, keepdims=True)
    o_ref[...] = xc * jax.lax.rsqrt(var + eps) * g_ref[...] + b_ref[...]


def _add_ln_kernel(x_ref, r_ref, g_ref, b_ref, o_ref, *, eps):
    _ln_body(x_ref[...] + r_ref[...], g_ref, b_ref, o_ref, eps)


def _ln_kernel(x_ref, g_ref, b_ref, o_ref, *, eps):
    _ln_body(x_ref[...], g_ref, b_ref, o_ref, eps)


def add_layernorm(x, r, gamma, beta, *, eps=1e-5):
    """LN(x + r) over last dim; x, r: (M, D) f32."""
    M, D = x.shape
    tm = _pick_tile(M, 512, 8)
    return pl.pallas_call(
        functools.partial(_add_ln_kernel, eps=eps),
        out_shape=jax.ShapeDtypeStruct((M, D), jnp.float32),
        grid=(M // tm,),
        in_specs=[
            pl.BlockSpec((tm, D), lambda i: (i, 0)),
            pl.BlockSpec((tm, D), lambda i: (i, 0)),
            pl.BlockSpec((1, D), lambda i: (0, 0)),
            pl.BlockSpec((1, D), lambda i: (0, 0)),
        ],
        out_specs=pl.BlockSpec((tm, D), lambda i: (i, 0)),
        compiler_params=pltpu.CompilerParams(dimension_semantics=("parallel",)),
    )(x, r, gamma.reshape(1, D), beta.reshape(1, D))


def layernorm(x, gamma, beta, *, eps=1e-5):
    M, D = x.shape
    tm = _pick_tile(M, 512, 8)
    return pl.pallas_call(
        functools.partial(_ln_kernel, eps=eps),
        out_shape=jax.ShapeDtypeStruct((M, D), jnp.float32),
        grid=(M // tm,),
        in_specs=[
            pl.BlockSpec((tm, D), lambda i: (i, 0)),
            pl.BlockSpec((1, D), lambda i: (0, 0)),
            pl.BlockSpec((1, D), lambda i: (0, 0)),
        ],
        out_specs=pl.BlockSpec((tm, D), lambda i: (i, 0)),
        compiler_params=pltpu.CompilerParams(dimension_semantics=("parallel",)),
    )(x, gamma.reshape(1, D), beta.reshape(1, D))


# ----------------------------------------------------------------------------
# multi-head attention core: all heads of one batch element per grid step
# ----------------------------------------------------------------------------
def _mha_core(q, kv, bias, *, nhead, dh, scale):
    """q: (Lq, D) f32, kv: (Lk, 2D) f32 (K then V lanes), bias: (Lq, Lk) f32."""
    D = nhead * dh
    qb = q.astype(jnp.bfloat16)
    kvb = kv.astype(jnp.bfloat16)
    outs = []
    for h in range(nhead):
        qh = qb[:, h * dh:(h + 1) * dh]
        kh = kvb[:, h * dh:(h + 1) * dh]
        vh = kvb[:, D + h * dh:D + (h + 1) * dh]
        # q . k^T without materializing a transpose (contract last dims)
        s = jax.lax.dot_general(qh, kh, (((1,), (1,)), ((), ())),
                                preferred_element_type=jnp.float32)
        s = s * scale + bias
        s = s - jnp.max(s, axis=-1, keepdims=True)
        p = jnp.exp(s)
        p = p * pl.reciprocal(jnp.sum(p, axis=-1, keepdims=True), approx=True)
        outs.append(jnp.dot(p.astype(jnp.bfloat16), vh,
                            preferred_element_type=jnp.float32))
    return jnp.concatenate(outs, axis=-1)


def _self_attn_kernel(qkv_ref, bias_ref, o_ref, *, nhead, dh, scale):
    D = nhead * dh
    qkv = qkv_ref[0]                       # (Lq, 3D)
    o_ref[0] = _mha_core(qkv[:, :D], qkv[:, D:], bias_ref[0],
                         nhead=nhead, dh=dh, scale=scale)


def _cross_attn_kernel(q_ref, kv_ref, bias_ref, o_ref, *, nhead, dh, scale):
    o_ref[0] = _mha_core(q_ref[0], kv_ref[0], bias_ref[0],
                         nhead=nhead, dh=dh, scale=scale)


def self_attention_block(x_bld, lp, nhead, bias):
    """x_bld: (B, L, D); returns sublayer output flattened (B*L, D)."""
    B, L, D = x_bld.shape
    Dh = D // nhead
    qkv = linear(x_bld.reshape(B * L, D), lp["qkv_w"], lp["qkv_b"]).reshape(B, L, 3 * D)
    attn = pl.pallas_call(
        functools.partial(_self_attn_kernel, nhead=nhead, dh=Dh, scale=1.0 / (Dh ** 0.5)),
        out_shape=jax.ShapeDtypeStruct((B, L, D), jnp.float32),
        grid=(B,),
        in_specs=[
            pl.BlockSpec((1, L, 3 * D), lambda b: (b, 0, 0)),
            pl.BlockSpec((1, L, L), lambda b: (b, 0, 0)),
        ],
        out_specs=pl.BlockSpec((1, L, D), lambda b: (b, 0, 0)),
        compiler_params=pltpu.CompilerParams(dimension_semantics=("parallel",)),
    )(qkv, bias)
    return linear(attn.reshape(B * L, D), lp["out_w"], lp["out_b"])


def cross_attention_block(x_bld, mem_bld, lp, nhead, bias):
    B, Lq, D = x_bld.shape
    Lk = mem_bld.shape[1]
    Dh = D // nhead
    q = linear(x_bld.reshape(B * Lq, D), lp["q_w"], lp["q_b"]).reshape(B, Lq, D)
    kv = linear(mem_bld.reshape(B * Lk, D), lp["kv_w"], lp["kv_b"]).reshape(B, Lk, 2 * D)
    attn = pl.pallas_call(
        functools.partial(_cross_attn_kernel, nhead=nhead, dh=Dh, scale=1.0 / (Dh ** 0.5)),
        out_shape=jax.ShapeDtypeStruct((B, Lq, D), jnp.float32),
        grid=(B,),
        in_specs=[
            pl.BlockSpec((1, Lq, D), lambda b: (b, 0, 0)),
            pl.BlockSpec((1, Lk, 2 * D), lambda b: (b, 0, 0)),
            pl.BlockSpec((1, Lq, Lk), lambda b: (b, 0, 0)),
        ],
        out_specs=pl.BlockSpec((1, Lq, D), lambda b: (b, 0, 0)),
        compiler_params=pltpu.CompilerParams(dimension_semantics=("parallel",)),
    )(q, kv, bias)
    return linear(attn.reshape(B * Lq, D), lp["out_w"], lp["out_b"])


# ----------------------------------------------------------------------------
# decoder layer / decoder stack (post-norm, ReLU FFN, eval-mode dropout)
# ----------------------------------------------------------------------------
def build_bias(attn_mask, key_padding_mask, B, Lq, Lk):
    """Additive bias (B, Lq, Lk) -- no per-head replication."""
    bias = jnp.zeros((B, Lq, Lk), jnp.float32)
    if attn_mask is not None:
        bias = bias + attn_mask.astype(jnp.float32)[None, :, :]
    if key_padding_mask is not None:
        pad = jnp.where(key_padding_mask, -1e9, 0.0).astype(jnp.float32)
        bias = bias + pad[:, None, :]
    return bias


def decoder_layer_fwd(x_bld, mem_bld, lp, nhead, self_bias, cross_bias):
    B, L, D = x_bld.shape
    M = B * L
    x2 = x_bld.reshape(M, D)
    # self-attention block (post-norm, residual fused into LN)
    sa = self_attention_block(x_bld, lp["self_attn"], nhead, self_bias)
    x2 = add_layernorm(x2, sa, lp["ln1_g"], lp["ln1_b"])
    # cross-attention block
    ca = cross_attention_block(x2.reshape(B, L, D), mem_bld, lp["cross_attn"],
                               nhead, cross_bias)
    x2 = add_layernorm(x2, ca, lp["ln2_g"], lp["ln2_b"])
    # feed-forward block (ReLU fused into first matmul)
    h = linear(x2, lp["w1"], lp["b1"], relu=True)
    ff = linear(h, lp["w2"], lp["b2"])
    x2 = add_layernorm(x2, ff, lp["ln3_g"], lp["ln3_b"])
    return x2.reshape(B, L, D)


def transformer_decoder(tgt, memory, params, nhead,
                        tgt_mask=None, memory_mask=None,
                        tgt_key_padding_mask=None, memory_key_padding_mask=None):
    Lt, B, D = tgt.shape
    Ls = memory.shape[0]
    # one layout change at entry / exit; everything inside is batch-major
    x = jnp.transpose(tgt, (1, 0, 2))        # (B, Lt, D)
    mem = jnp.transpose(memory, (1, 0, 2))   # (B, Ls, D)
    self_bias = build_bias(tgt_mask, tgt_key_padding_mask, B, Lt, Lt)
    cross_bias = build_bias(memory_mask, memory_key_padding_mask, B, Lt, Ls)
    for lp in params["layers"]:
        x = decoder_layer_fwd(x, mem, lp, nhead, self_bias, cross_bias)
    out = layernorm(x.reshape(B * Lt, D), params["norm_g"], params["norm_b"])
    return jnp.transpose(out.reshape(B, Lt, D), (1, 0, 2))


# ----------------------------------------------------------------------------
# Deterministic parameter init (weights stored bf16 for the MXU, biases/LN in f32)
# ----------------------------------------------------------------------------
def init_params(key, d, nhead, dff, num_layers):
    def w(k, shape, scale=0.02):
        return (scale * jax.random.normal(k, shape, jnp.float32)).astype(jnp.bfloat16)

    keys = jax.random.split(key, num_layers)
    layers = []
    for i in range(num_layers):
        ks = jax.random.split(keys[i], 7)
        layers.append({
            # self-attention: fused QKV projection
            "self_attn": {"qkv_w": w(ks[0], (d, 3 * d)),
                          "qkv_b": jnp.zeros((3 * d,), jnp.float32),
                          "out_w": w(ks[1], (d, d)),
                          "out_b": jnp.zeros((d,), jnp.float32)},
            # cross-attention: Q projection + fused KV projection
            "cross_attn": {"q_w": w(ks[2], (d, d)),
                           "q_b": jnp.zeros((d,), jnp.float32),
                           "kv_w": w(ks[3], (d, 2 * d)),
                           "kv_b": jnp.zeros((2 * d,), jnp.float32),
                           "out_w": w(ks[4], (d, d)),
                           "out_b": jnp.zeros((d,), jnp.float32)},
            "w1": w(ks[5], (d, dff)), "b1": jnp.zeros((dff,), jnp.float32),
            "w2": w(ks[6], (dff, d)), "b2": jnp.zeros((d,), jnp.float32),
            "ln1_g": jnp.ones((d,), jnp.float32), "ln1_b": jnp.zeros((d,), jnp.float32),
            "ln2_g": jnp.ones((d,), jnp.float32), "ln2_b": jnp.zeros((d,), jnp.float32),
            "ln3_g": jnp.ones((d,), jnp.float32), "ln3_b": jnp.zeros((d,), jnp.float32),
        })
    return {"layers": layers,
            "norm_g": jnp.ones((d,), jnp.float32),
            "norm_b": jnp.zeros((d,), jnp.float32)}


# ----------------------------------------------------------------------------
if __name__ == "__main__":
    Lt, Ls, B, D, H, F, NL = 8, 16, 2, 32, 4, 64, 2

    key = jax.random.PRNGKey(0)
    k_p, k_t, k_m = jax.random.split(key, 3)
    params = init_params(k_p, D, H, F, NL)

    tgt = jax.random.normal(k_t, (Lt, B, D), jnp.float32)      # [tgt_seq, batch, emb]
    memory = jax.random.normal(k_m, (Ls, B, D), jnp.float32)   # [src_seq, batch, emb]

    # causal target mask (additive float), plus some key-padding masks
    tgt_mask = jnp.where(jnp.triu(jnp.ones((Lt, Lt), dtype=bool), k=1),
                         -1e9, 0.0).astype(jnp.float32)
    tgt_kpm = jnp.zeros((B, Lt), dtype=bool).at[1, -1].set(True)
    mem_kpm = jnp.zeros((B, Ls), dtype=bool).at[0, -2:].set(True)

    out = transformer_decoder(tgt, memory, params, H,
                              tgt_mask=tgt_mask,
                              memory_mask=None,
                              tgt_key_padding_mask=tgt_kpm,
                              memory_key_padding_mask=mem_kpm)
    out = jax.block_until_ready(out)
    assert out.shape == (Lt, B, D) and out.dtype == jnp.float32
    assert bool(jnp.all(jnp.isfinite(out)))
    print("KERNEL_OK")
</pallas_src>

<mosaic_0001>
module attributes {stable_mosaic.version = 11 : i64} {
  func.func @_linear_kernel(%arg0: i32, %arg1: i32, %arg2: i32, %arg3: memref<16x32xf32, #tpu.memory_space<vmem>>, %arg4: memref<32x96xbf16, #tpu.memory_space<vmem>>, %arg5: memref<1x96xf32, #tpu.memory_space<vmem>>, %arg6: memref<16x96xf32, #tpu.memory_space<vmem>>, %arg7: memref<16x96xf32, #tpu.memory_space<vmem>>) attributes {dimension_semantics = [#tpu.dimension_semantics<parallel>, #tpu.dimension_semantics<parallel>, #tpu.dimension_semantics<arbitrary>], iteration_bounds = array<i64: 1, 1, 1>, scalar_prefetch = 0 : i64, scratch_operands = 1 : i64, tpu.core_type = #tpu.core_type<tc>, window_params = [{transform_indices = @transform_0, window_bounds = array<i64: 16, 32>}, {transform_indices = @transform_1, window_bounds = array<i64: 32, 96>}, {transform_indices = @transform_2, window_bounds = array<i64: 1, 96>}, {transform_indices = @transform_3, window_bounds = array<i64: 16, 96>}]} {
    %c0_i32 = arith.constant 0 : i32
    %0 = arith.cmpi eq, %arg2, %c0_i32 : i32
    %1 = arith.extui %0 : i1 to i32
    %c0_i32_0 = arith.constant 0 : i32
    %2 = arith.cmpi ne, %1, %c0_i32_0 : i32
    scf.if %2 {
      %cst_10 = arith.constant 0.000000e+00 : f32
      %13 = vector.broadcast %cst_10 : f32 to vector<16x96xf32>
      %c0_11 = arith.constant 0 : index
      %c0_12 = arith.constant 0 : index
      %14 = vector.load %arg7[%c0_11, %c0_12] : memref<16x96xf32, #tpu.memory_space<vmem>>, vector<16x96xf32>
      tpu.vector_store %arg7[%c0_11, %c0_12], %13 {strides = array<i32>} : memref<16x96xf32, #tpu.memory_space<vmem>>, vector<16x96xf32>,
    } else {
    }
    %c0 = arith.constant 0 : index
    %c0_1 = arith.constant 0 : index
    %3 = vector.load %arg7[%c0, %c0_1] : memref<16x96xf32, #tpu.memory_space<vmem>>, vector<16x96xf32>
    %c0_2 = arith.constant 0 : index
    %c0_3 = arith.constant 0 : index
    %4 = vector.load %arg3[%c0_2, %c0_3] : memref<16x32xf32, #tpu.memory_space<vmem>>, vector<16x32xf32>
    %5 = arith.truncf %4 : vector<16x32xf32> to vector<16x32xbf16>
    %c0_4 = arith.constant 0 : index
    %c0_5 = arith.constant 0 : index
    %6 = vector.load %arg4[%c0_4, %c0_5] : memref<32x96xbf16, #tpu.memory_space<vmem>>, vector<32x96xbf16>
    %cst = arith.constant dense<0.000000e+00> : vector<16x96xf32>
    %7 = tpu.matmul %5, %6, %cst {dimension_numbers = #tpu.dot_dimension_numbers<[1], [0], [0], [1], [0, 0, 1, 1], [], []>} : vector<16x32xbf16>, vector<32x96xbf16>, vector<16x96xf32> -> vector<16x96xf32>
    %8 = arith.addf %3, %7 : vector<16x96xf32>
    %c0_6 = arith.constant 0 : index
    %c0_7 = arith.constant 0 : index
    %9 = vector.load %arg7[%c0_6, %c0_7] : memref<16x96xf32, #tpu.memory_space<vmem>>, vector<16x96xf32>
    tpu.vector_store %arg7[%c0_6, %c0_7], %8 {strides = array<i32>} : memref<16x96xf32, #tpu.memory_space<vmem>>, vector<16x96xf32>,
    %c0_i32_8 = arith.constant 0 : i32
    %10 = arith.cmpi eq, %arg2, %c0_i32_8 : i32
    %11 = arith.extui %10 : i1 to i32
    %c0_i32_9 = arith.constant 0 : i32
    %12 = arith.cmpi ne, %11, %c0_i32_9 : i32
    scf.if %12 {
      %c0_10 = arith.constant 0 : index
      %c0_11 = arith.constant 0 : index
      %13 = vector.load %arg7[%c0_10, %c0_11] : memref<16x96xf32, #tpu.memory_space<vmem>>, vector<16x96xf32>
      %c0_12 = arith.constant 0 : index
      %c0_13 = arith.constant 0 : index
      %14 = vector.load %arg5[%c0_12, %c0_13] : memref<1x96xf32, #tpu.memory_space<vmem>>, vector<1x96xf32>
      %15 = vector.broadcast %14 : vector<1x96xf32> to vector<16x96xf32>
      %16 = arith.addf %13, %15 : vector<16x96xf32>
      %c0_14 = arith.constant 0 : index
      %c0_15 = arith.constant 0 : index
      %17 = vector.load %arg6[%c0_14, %c0_15] : memref<16x96xf32, #tpu.memory_space<vmem>>, vector<16x96xf32>
      tpu.vector_store %arg6[%c0_14, %c0_15], %16 {strides = array<i32>} : memref<16x96xf32, #tpu.memory_space<vmem>>, vector<16x96xf32>,
    } else {
    }
    return
  }
  func.func @transform_0(%arg0: i32, %arg1: i32, %arg2: i32) -> (i32, i32) {
    %c0_i32 = arith.constant 0 : i32
    return %arg0, %arg2 : i32, i32
  }
  func.func @transform_1(%arg0: i32, %arg1: i32, %arg2: i32) -> (i32, i32) {
    %c0_i32 = arith.constant 0 : i32
    return %arg2, %arg1 : i32, i32
  }
  func.func @transform_2(%arg0: i32, %arg1: i32, %arg2: i32) -> (i32, i32) {
    %c0_i32 = arith.constant 0 : i32
    %c0_i32_0 = arith.constant 0 : i32
    return %c0_i32, %arg1 : i32, i32
  }
  func.func @transform_3(%arg0: i32, %arg1: i32, %arg2: i32) -> (i32, i32) {
    %c0_i32 = arith.constant 0 : i32
    return %arg0, %arg1 : i32, i32
  }
}

</mosaic_0001>

<llo_original>
// kernel: tpu_custom_call.1
$region0: #{tpu_custom_call.1}
  #allocation0 [shape = 'u32[]', space=smem, size = 0x4, offset = 0x4, fixed_abs, tag = 'smem constant byte address 0x4 - core index']
  #allocation1 [shape = 'u32[144,128]{1,0:T(1,128)}', space=vmem, size = 0x12000, scoped, tag = 'internal scratch']
  #allocation2 [shape = 'f32[16,96]{1,0:T(8,128)}', space=vmem, size = 0x2000, scoped, tag = 'scratch operand']
  %s0 = inlined_call_operand.hbm [shape: f32[16,32], index: 0, kind: input, shape index: {}]
  %s1 = inlined_call_operand.hbm [shape: bf16[32,96], index: 1, kind: input, shape index: {}]
  %s2 = inlined_call_operand.vmem [shape: f32[1,96], index: 2, kind: input, shape index: {}]
  %s3 = inlined_call_operand.hbm [shape: f32[16,96], index: 3, kind: output, shape index: {}]
  %s4 = sld [smem:[#allocation0]]
  $region38: #{tpu_custom_call.1} parent=0
    _
  %s6 = ssub.s32 1, %s4
  %s7 = scalar_select 0, %s6, %s4
  $region1: #{tpu_custom_call.1} parent=0
    #allocation3 [shape = 'u8[8192]{0}', space=vmem, size = 0x2000, scoped, tag = 'input window, operand 0, single buffered']
    #allocation4 [shape = 's32[1]{0}', space=sflag, size = 0x4, scoped, tag = 'scoped memory for tpu_custom_call.1']
    #allocation5 [shape = 's32[1]{0}', space=sflag, size = 0x4, scoped, tag = 'scoped memory for tpu_custom_call.1']
    #allocation6 [shape = 'u8[8192]{0}', space=vmem, size = 0x2000, scoped, tag = 'input window, operand 1, single buffered']
    #allocation7 [shape = 's32[1]{0}', space=sflag, size = 0x4, scoped, tag = 'scoped memory for tpu_custom_call.1']
    #allocation8 [shape = 'u8[8192]{0}', space=vmem, size = 0x2000, scoped, tag = 'output window, operand 0, single buffered']
    %8 = vsyncpa [#allocation4], 0
    %9 = vsyncpa [#allocation7], 0
    %10 = vsyncpa [#allocation5], 0
    // Predicated region
    $region2: #{tpu_custom_call.1} parent=1 // pred_check
      _
    $region3: #{tpu_custom_call.1} parent=1 // pred_check_branch
      %12 = sbr.rel (0) target = $region5
    $region4: #{tpu_custom_call.1} parent=1 // pred_region
      %s14 = ssub.s32 256, 256
      %15 = vsyncadd [#allocation4], %s14
      %s16 = sshll.u32 [#allocation3], 4
      %s17 = int_to_ptr.vmem [resolvable:$true] %s16
      %22 = dma.hbm_to_vmem [thread:$0]  %s0, 256, %s17, [#allocation4], 128, 128, 8
    $region5: #{tpu_custom_call.1} parent=1 // pred_fallthru
      _
    // Predicated region
    $region6: #{tpu_custom_call.1} parent=1 // pred_check
      _
    $region7: #{tpu_custom_call.1} parent=1 // pred_check_branch
      %24 = sbr.rel (0) target = $region9
    $region8: #{tpu_custom_call.1} parent=1 // pred_region
      %s26 = ssub.s32 256, 256
      %27 = vsyncadd [#allocation7], %s26
      %s28 = sshll.u32 [#allocation6], 4
      %s29 = int_to_ptr.vmem [resolvable:$true] %s28
      %34 = dma.hbm_to_vmem [thread:$0]  %s1, 256, %s29, [#allocation7], 64, 64, 4
    $region9: #{tpu_custom_call.1} parent=1 // pred_fallthru
      _
    // Predicated region
    $region10: #{tpu_custom_call.1} parent=1 // pred_check
      _
    $region11: #{tpu_custom_call.1} parent=1 // pred_check_branch
      %36 = sbr.rel (0) target = $region13
    $region12: #{tpu_custom_call.1} parent=1 // pred_region
      _
    $region13: #{tpu_custom_call.1} parent=1 // pred_fallthru
      _
    // Predicated region
    $region14: #{tpu_custom_call.1} parent=1 // pred_check
      _
    $region15: #{tpu_custom_call.1} parent=1 // pred_check_branch
      %38 = sbr.rel (0) target = $region17
    $region16: #{tpu_custom_call.1} parent=1 // pred_region
      %39 = dma.done [#allocation4], 256
    $region17: #{tpu_custom_call.1} parent=1 // pred_fallthru
      _
    // Predicated region
    $region18: #{tpu_custom_call.1} parent=1 // pred_check
      _
    $region19: #{tpu_custom_call.1} parent=1 // pred_check_branch
      %41 = sbr.rel (0) target = $region21
    $region20: #{tpu_custom_call.1} parent=1 // pred_region
      %42 = dma.done [#allocation7], 256
    $region21: #{tpu_custom_call.1} parent=1 // pred_fallthru
      _
    %p44 = scmp.eq.s32.totalorder 0, 0
    // Predicated region
    $region22: #{tpu_custom_call.1} parent=1 // pred_check
      %p45 = pneg %p44
    $region23: #{tpu_custom_call.1} parent=1 // pred_check_branch
      %47 = sbr.rel (%p45) target = $region25
    $region24: #{tpu_custom_call.1} parent=1 // pred_region
      %vm48 = vcmask 785408
      %49 = vst.msk [vmem:[#allocation2] sm:$0xff] %vm48, 0.0
      %50 = vst.msk [vmem:[#allocation2 + $0x8] sm:$0xff] %vm48, 0.0
    $region25: #{tpu_custom_call.1} parent=1 // pred_fallthru
      _
    %v51 = vld [vmem:[#allocation2] sm:$0xff]
    %v52 = vld [vmem:[#allocation2 + $0x8] sm:$0xff]
    %v53 = vld [vmem:[#allocation3] sm:$0xff]
    %v54 = vld [vmem:[#allocation3 + $0x8] sm:$0xff]
    %v55 = vpack.c.bf16 %v54, %v53
    %v56 = vld [vmem:[#allocation6] sm:$0xf]
    %v57 = vld [vmem:[#allocation6 + $0x4] sm:$0xf]
    %v58 = vld [vmem:[#allocation6 + $0x8] sm:$0xf]
    %v59 = vld [vmem:[#allocation6 + $0xc] sm:$0xf]
    %v64 = vunpack.c.l.b16 %v56
    %v65 = vunpack.c.l.b16 %v57
    %v66 = vunpack.c.l.b16 %v58
    %v67 = vunpack.c.l.b16 %v59
    %v68 = vpack.c.b16 %v65, %v64
    %v69 = vpack.c.b16 %v67, %v66
    %vm72 = vcmask 261120
    %v74 = vsel %vm72, %v55, 0
    %76 = vmatprep.subr.bf16.mxu0 0
    %77 = vmatpush1.bf16.msra.mxu0 %v68
    %78 = vmatprep.subr.bf16.mxu0 0
    %79 = vmatpush1.bf16.msra.mxu0 %v69
    %80 = vmatprep.subr.bf16.mxu0 0
    %81 = vmatpush1.bf16.msra.mxu0 0
    %82 = vmatprep.subr.bf16.mxu0 0
    %83 = vmatpush1.bf16.msra.mxu0 0
    %84 = vmatprep.subr.bf16.mxu0 0
    %85 = vmatpush1.bf16.msra.mxu0 0
    %86 = vmatprep.subr.bf16.mxu0 0
    %87 = vmatpush1.bf16.msra.mxu0 0
    %88 = vmatprep.subr.bf16.mxu0 0
    %89 = vmatpush1.bf16.msra.mxu0 0
    %90 = vmatprep.subr.bf16.mxu0 0
    %91 = vmatpush1.bf16.msra.mxu0 0
    %92 = vmatprep.subr.bf16.mxu0 0
    %93 = vmatpush1.bf16.msra.mxu0 0
    %94 = vmatprep.subr.bf16.mxu0 0
    %95 = vmatpush1.bf16.msra.mxu0 0
    %96 = vmatprep.subr.bf16.mxu0 0
    %97 = vmatpush1.bf16.msra.mxu0 0
    %98 = vmatprep.subr.bf16.mxu0 0
    %99 = vmatpush1.bf16.msra.mxu0 0
    %100 = vmatprep.subr.bf16.mxu0 0
    %101 = vmatpush1.bf16.msra.mxu0 0
    %102 = vmatprep.subr.bf16.mxu0 0
    %103 = vmatpush1.bf16.msra.mxu0 0
    %104 = vmatprep.subr.bf16.mxu0 0
    %105 = vmatpush1.bf16.msra.mxu0 0
    %106 = vmatprep.subr.bf16.mxu0 0
    %107 = vmatpush1.bf16.msra.mxu0 0
    %108 = vmatprep.mubr.bf16.mxu0 0
    %109 = vmatmul.mubr.bf16.gmra.mrb[0].mxu0 %v74
    %v110 = vpop.f32.mrb[0].mxu0
    %v111 = vadd.f32 0.0, %v110
    %v112 = vpop.f32.mrb[0].mxu0
    %v113 = vpop.f32.mrb[0].mxu0
    %v114 = vadd.f32 0.0, %v113
    %v115 = vpop.f32.mrb[0].mxu0
    %116 = vdwg.mxu0
    %v117 = vadd.f32 %v51, %v111
    %v118 = vadd.f32 %v52, %v114
    %vm119 = vcmask 785408
    %120 = vst.msk [vmem:[#allocation2] sm:$0xff] %vm119, %v117
    %121 = vst.msk [vmem:[#allocation2 + $0x8] sm:$0xff] %vm119, %v118
    // Predicated region
    $region26: #{tpu_custom_call.1} parent=1 // pred_check
      %p122 = pneg %p44
    $region27: #{tpu_custom_call.1} parent=1 // pred_check_branch
      %124 = sbr.rel (%p122) target = $region29
    $region28: #{tpu_custom_call.1} parent=1 // pred_region
      %v125 = vld [vmem:[#allocation2] sm:$0xff]
      %v126 = vld [vmem:[#allocation2 + $0x8] sm:$0xff]
      %v127 = vld [vmem:[%s2] sm:$0x1]
      %v129 = vlaneseq
      %v130 = vshrl.u32 %v129, 7
      %v131 = vsub.s32 0, %v130
      %v132 = vrot.slane %v127, %v131
      %v134 = vadd.f32 %v125, %v132
      %v135 = vadd.f32 %v126, %v132
      %136 = vst.msk [vmem:[#allocation8] sm:$0xff] %vm119, %v134
      %137 = vst.msk [vmem:[#allocation8 + $0x8] sm:$0xff] %vm119, %v135
    $region29: #{tpu_custom_call.1} parent=1 // pred_fallthru
      _
    // Predicated region
    $region30: #{tpu_custom_call.1} parent=1 // pred_check
      _
    $region31: #{tpu_custom_call.1} parent=1 // pred_check_branch
      %139 = sbr.rel (0) target = $region33
    $region32: #{tpu_custom_call.1} parent=1 // pred_region
      %s141 = ssub.s32 256, 256
      %142 = vsyncadd [#allocation5], %s141
      %s143 = sshll.u32 [#allocation8], 4
      %s144 = int_to_ptr.vmem [resolvable:$true] %s143
      %149 = dma.vmem_to_hbm [thread:$0]  %s144, 256, %s3, [#allocation5], 128, 128, 8
    $region33: #{tpu_custom_call.1} parent=1 // pred_fallthru
      _
    // Predicated region
    $region34: #{tpu_custom_call.1} parent=1 // pred_check
      _
    $region35: #{tpu_custom_call.1} parent=1 // pred_check_branch
      %151 = sbr.rel (0) target = $region37
    $region36: #{tpu_custom_call.1} parent=1 // pred_region
      %152 = dma.done [#allocation5], 256
    $region37: #{tpu_custom_call.1} parent=1 // pred_fallthru
      _
    %153 = vsyncpa [#allocation4], 1
    %154 = vsyncpa [#allocation7], 1
    %155 = vsyncpa [#allocation5], 1

</llo_original>
